<compile_context>
chip_gen: v6e
topology: v6e:2x2x1
jax: 0.10.0
libtpu: 0.0.40
codegen_flags: <defaults>
</compile_context>

<pallas_src>
import functools

import jax
import jax.numpy as jnp
from jax.experimental import pallas as pl
from jax.experimental.pallas import tpu as pltpu


_LANE = 128
_SUBLANE = 8


def _round_up(n, m):
    return ((n + m - 1) // m) * m


# --------------------------------------------------------------------------
# Kernel: one batch tile of the whole MLP forward, fused.
#   refs layout: x_ref, (w0, b0, w1, b1, ..., wL, bL), out_ref
# --------------------------------------------------------------------------
def _flexnet_kernel(*refs, num_layers: int, final_act: str, out_dim: int):
    x_ref = refs[0]
    out_ref = refs[-1]
    param_refs = refs[1:-1]  # 2 * num_layers refs: w0, b0, w1, b1, ...

    h = x_ref[...].astype(jnp.float32)                       # (TB, in_dim) f32

    for layer in range(num_layers):
        w = param_refs[2 * layer][...]                       # bf16, VMEM-resident
        b = param_refs[2 * layer + 1][...]                   # f32 (1, out), broadcasts
        # bf16 x bf16 -> f32 accumulation on the MXU.
        h = jnp.dot(h.astype(jnp.bfloat16), w,
                    preferred_element_type=jnp.float32) + b
        if layer < num_layers - 1:
            h = jnp.maximum(h, 0.0)                          # ReLU hidden activation (f32 VPU)

    if final_act == "multi_class":
        # Class dim is zero-padded to 128 lanes; mask pad lanes before the stable log-softmax.
        lane = jax.lax.broadcasted_iota(jnp.int32, h.shape, dimension=1)
        valid = lane < out_dim
        hm = jnp.where(valid, h, jnp.float32(-1e30))
        m = jnp.max(hm, axis=-1, keepdims=True)
        z = hm - m
        lse = jnp.log(jnp.sum(jnp.exp(z), axis=-1, keepdims=True))
        h = jnp.where(valid, z - lse, 0.0)
    # 'regression' -> Identity: nothing to do (padded lanes carry zeros, sliced off outside).

    out_ref[...] = h.astype(out_ref.dtype)                   # full-lane, unmasked store


def _vmem_limit_bytes(tb, input_dim, weight_shapes, out_pad):
    total = 0
    total += 2 * tb * input_dim * 4                 # double-buffered x tile (f32)
    total += 2 * tb * out_pad * 4                   # double-buffered out tile (f32)
    for k, n in weight_shapes:                      # resident weights (bf16) + biases (f32)
        total += 2 * (k * n * 2 + n * 4)
    widest = max([input_dim, out_pad] + [n for _, n in weight_shapes])
    total += 4 * tb * widest * 4                    # live f32/bf16 intermediates
    total = int(total * 2)                          # headroom for compiler temporaries
    return max(4 << 20, min(total, 64 << 20))       # never exceed v7x physical 64 MiB


# --------------------------------------------------------------------------
# Wrapper: batch-tiled grid, whole-array weight residency, padded lane-dense output.
# --------------------------------------------------------------------------
def flexnet_forward(x, params, *, model: str, block_batch=None):
    """x: (batch, input_dim).  params: list of (W_(in,out), b_(out,)) tuples."""
    num_layers = len(params)
    out_dim = params[-1][0].shape[1]
    batch, input_dim = x.shape

    out_pad = _round_up(max(out_dim, _LANE), _LANE)

    if block_batch is None:
        tb = 256 if batch >= 256 else _round_up(max(batch, _SUBLANE), _SUBLANE)
    else:
        tb = _round_up(max(block_batch, _SUBLANE), _SUBLANE)
    padded_batch = _round_up(max(batch, tb), tb)

    x_p = x.astype(jnp.float32)
    if padded_batch != batch:
        x_p = jnp.pad(x_p, ((0, padded_batch - batch), (0, 0)))

    flat_inputs = [x_p]
    in_specs = [pl.BlockSpec((tb, input_dim), lambda i: (i, 0))]
    weight_shapes = []
    for li, (w, b) in enumerate(params):
        w32 = jnp.asarray(w, jnp.float32)
        b32 = jnp.asarray(b, jnp.float32)
        if li == num_layers - 1:
            pad_n = out_pad - w32.shape[1]
            if pad_n:
                w32 = jnp.pad(w32, ((0, 0), (0, pad_n)))
                b32 = jnp.pad(b32, ((0, pad_n),))
        w_bf16 = w32.astype(jnp.bfloat16)       # halve weight DMA bytes; bf16 is MXU-native
        b_2d = b32.reshape(1, -1)               # keep everything 2-D for the TPU
        flat_inputs += [w_bf16, b_2d]
        in_specs += [
            pl.BlockSpec(w_bf16.shape, lambda i: (0, 0)),   # whole weight stays VMEM-resident
            pl.BlockSpec(b_2d.shape, lambda i: (0, 0)),
        ]
        weight_shapes.append(w_bf16.shape)

    out_specs = pl.BlockSpec((tb, out_pad), lambda i: (i, 0))
    grid = (padded_batch // tb,)

    flops = sum(2 * padded_batch * k * n for k, n in weight_shapes)
    transcendentals = padded_batch * out_pad if model == "multi_class" else 0
    bytes_accessed = (sum(int(a.size) * a.dtype.itemsize for a in flat_inputs)
                      + padded_batch * out_pad * 4)

    kernel = functools.partial(_flexnet_kernel, num_layers=num_layers,
                               final_act=model, out_dim=out_dim)

    out_padded = pl.pallas_call(
        kernel,
        out_shape=jax.ShapeDtypeStruct((padded_batch, out_pad), jnp.float32),
        grid_spec=pltpu.PrefetchScalarGridSpec(
            num_scalar_prefetch=0,
            grid=grid,
            in_specs=in_specs,
            out_specs=out_specs,
        ),
        compiler_params=pltpu.CompilerParams(
            dimension_semantics=("parallel",),   # shard batch tiles across v7x's 2 TCs
            vmem_limit_bytes=_vmem_limit_bytes(tb, input_dim, weight_shapes, out_pad),
        ),
        cost_estimate=pl.CostEstimate(flops=flops,
                                      transcendentals=transcendentals,
                                      bytes_accessed=bytes_accessed),
    )(*flat_inputs)

    return out_padded[:batch, :out_dim]


# --------------------------------------------------------------------------
# Deterministic parameter construction (mirrors FlexNet.__init__ shapes).
# --------------------------------------------------------------------------
def make_flexnet_params(input_dim, hidden_dims, model, key):
    out_dim_map = {"regression": 1, "multi_class": 5}
    dims = [input_dim] + list(hidden_dims) + [out_dim_map[model]]
    params = []
    for i in range(len(dims) - 1):
        key, kw, kb = jax.random.split(key, 3)
        fan_in = dims[i]
        scale = 1.0 / jnp.sqrt(jnp.float32(fan_in))
        w = jax.random.uniform(kw, (dims[i], dims[i + 1]), jnp.float32, -scale, scale)
        b = jax.random.uniform(kb, (dims[i + 1],), jnp.float32, -scale, scale)
        params.append((w, b))
    return params


# Pure-JAX reference (matching the kernel's bf16 matmul / f32 accumulate recipe).
def flexnet_reference(x, params, *, model: str):
    h = x.astype(jnp.float32)
    for i, (w, b) in enumerate(params):
        h = jnp.dot(h.astype(jnp.bfloat16), w.astype(jnp.bfloat16),
                    preferred_element_type=jnp.float32) + b
        if i < len(params) - 1:
            h = jnp.maximum(h, 0.0)
    if model == "multi_class":
        h = jax.nn.log_softmax(h, axis=-1)
    return h


if __name__ == "__main__":
    # Small shapes consistent with the module: batch=32, input_dim=32, hidden=[64, 32].
    input_dim = 32
    hidden_dims = [64, 32]
    batch = 32

    key = jax.random.PRNGKey(0)
    key, kx = jax.random.split(key)
    x = jax.random.normal(kx, (batch, input_dim), jnp.float32)

    out_dims = {"regression": 1, "multi_class": 5}
    for model in ("multi_class", "regression"):
        key, kp = jax.random.split(key)
        params = make_flexnet_params(input_dim, hidden_dims, model, kp)

        # block_batch=8 -> grid=(4,) batch tiles (exercises the pipelined grid).
        out = flexnet_forward(x, params, model=model, block_batch=8)
        out = jax.block_until_ready(out)

        ref = flexnet_reference(x, params, model=model)
        assert out.shape == (batch, out_dims[model]), (model, out.shape)
        err = float(jnp.max(jnp.abs(out - ref)))
        assert err < 1e-3, (model, err)

    print("KERNEL_OK")
</pallas_src>

<mosaic_0001>
module attributes {stable_mosaic.version = 11 : i64} {
  func.func @_flexnet_kernel(%arg0: i32, %arg1: memref<8x32xf32, #tpu.memory_space<vmem>>, %arg2: memref<32x64xbf16, #tpu.memory_space<vmem>>, %arg3: memref<1x64xf32, #tpu.memory_space<vmem>>, %arg4: memref<64x32xbf16, #tpu.memory_space<vmem>>, %arg5: memref<1x32xf32, #tpu.memory_space<vmem>>, %arg6: memref<32x128xbf16, #tpu.memory_space<vmem>>, %arg7: memref<1x128xf32, #tpu.memory_space<vmem>>, %arg8: memref<8x128xf32, #tpu.memory_space<vmem>>) attributes {dimension_semantics = [#tpu.dimension_semantics<parallel>], iteration_bounds = array<i64: 4>, scalar_prefetch = 0 : i64, scratch_operands = 0 : i64, tpu.core_type = #tpu.core_type<tc>, window_params = [{transform_indices = @transform_0, window_bounds = array<i64: 8, 32>}, {pipeline_mode = #tpu.pipeline_mode<synchronous>, transform_indices = @transform_1, window_bounds = array<i64: 32, 64>}, {pipeline_mode = #tpu.pipeline_mode<synchronous>, transform_indices = @transform_2, window_bounds = array<i64: 1, 64>}, {pipeline_mode = #tpu.pipeline_mode<synchronous>, transform_indices = @transform_3, window_bounds = array<i64: 64, 32>}, {pipeline_mode = #tpu.pipeline_mode<synchronous>, transform_indices = @transform_4, window_bounds = array<i64: 1, 32>}, {pipeline_mode = #tpu.pipeline_mode<synchronous>, transform_indices = @transform_5, window_bounds = array<i64: 32, 128>}, {pipeline_mode = #tpu.pipeline_mode<synchronous>, transform_indices = @transform_6, window_bounds = array<i64: 1, 128>}, {transform_indices = @transform_7, window_bounds = array<i64: 8, 128>}]} {
    %c0 = arith.constant 0 : index
    %c0_0 = arith.constant 0 : index
    %0 = vector.load %arg1[%c0, %c0_0] : memref<8x32xf32, #tpu.memory_space<vmem>>, vector<8x32xf32>
    %c0_1 = arith.constant 0 : index
    %c0_2 = arith.constant 0 : index
    %1 = vector.load %arg2[%c0_1, %c0_2] : memref<32x64xbf16, #tpu.memory_space<vmem>>, vector<32x64xbf16>
    %c0_3 = arith.constant 0 : index
    %c0_4 = arith.constant 0 : index
    %2 = vector.load %arg3[%c0_3, %c0_4] : memref<1x64xf32, #tpu.memory_space<vmem>>, vector<1x64xf32>
    %3 = arith.truncf %0 : vector<8x32xf32> to vector<8x32xbf16>
    %cst = arith.constant dense<0.000000e+00> : vector<8x64xf32>
    %4 = tpu.matmul %3, %1, %cst {dimension_numbers = #tpu.dot_dimension_numbers<[1], [0], [0], [1], [0, 0, 1, 1], [], []>} : vector<8x32xbf16>, vector<32x64xbf16>, vector<8x64xf32> -> vector<8x64xf32>
    %5 = vector.broadcast %2 : vector<1x64xf32> to vector<8x64xf32>
    %6 = arith.addf %4, %5 : vector<8x64xf32>
    %cst_5 = arith.constant 0.000000e+00 : f32
    %7 = vector.broadcast %cst_5 : f32 to vector<8x64xf32>
    %8 = arith.maximumf %6, %7 : vector<8x64xf32>
    %c0_6 = arith.constant 0 : index
    %c0_7 = arith.constant 0 : index
    %9 = vector.load %arg4[%c0_6, %c0_7] : memref<64x32xbf16, #tpu.memory_space<vmem>>, vector<64x32xbf16>
    %c0_8 = arith.constant 0 : index
    %c0_9 = arith.constant 0 : index
    %10 = vector.load %arg5[%c0_8, %c0_9] : memref<1x32xf32, #tpu.memory_space<vmem>>, vector<1x32xf32>
    %11 = arith.truncf %8 : vector<8x64xf32> to vector<8x64xbf16>
    %cst_10 = arith.constant dense<0.000000e+00> : vector<8x32xf32>
    %12 = tpu.matmul %11, %9, %cst_10 {dimension_numbers = #tpu.dot_dimension_numbers<[1], [0], [0], [1], [0, 0, 1, 1], [], []>} : vector<8x64xbf16>, vector<64x32xbf16>, vector<8x32xf32> -> vector<8x32xf32>
    %13 = vector.broadcast %10 : vector<1x32xf32> to vector<8x32xf32>
    %14 = arith.addf %12, %13 : vector<8x32xf32>
    %cst_11 = arith.constant 0.000000e+00 : f32
    %15 = vector.broadcast %cst_11 : f32 to vector<8x32xf32>
    %16 = arith.maximumf %14, %15 : vector<8x32xf32>
    %c0_12 = arith.constant 0 : index
    %c0_13 = arith.constant 0 : index
    %17 = vector.load %arg6[%c0_12, %c0_13] : memref<32x128xbf16, #tpu.memory_space<vmem>>, vector<32x128xbf16>
    %c0_14 = arith.constant 0 : index
    %c0_15 = arith.constant 0 : index
    %18 = vector.load %arg7[%c0_14, %c0_15] : memref<1x128xf32, #tpu.memory_space<vmem>>, vector<1x128xf32>
    %19 = arith.truncf %16 : vector<8x32xf32> to vector<8x32xbf16>
    %cst_16 = arith.constant dense<0.000000e+00> : vector<8x128xf32>
    %20 = tpu.matmul %19, %17, %cst_16 {dimension_numbers = #tpu.dot_dimension_numbers<[1], [0], [0], [1], [0, 0, 1, 1], [], []>} : vector<8x32xbf16>, vector<32x128xbf16>, vector<8x128xf32> -> vector<8x128xf32>
    %21 = vector.broadcast %18 : vector<1x128xf32> to vector<8x128xf32>
    %22 = arith.addf %20, %21 : vector<8x128xf32>
    %23 = tpu.iota {dimensions = array<i32: 1>} : vector<8x128xi32>
    %c5_i32 = arith.constant 5 : i32
    %24 = vector.broadcast %c5_i32 : i32 to vector<8x128xi32>
    %25 = arith.cmpi slt, %23, %24 : vector<8x128xi32>
    %cst_17 = arith.constant -1.000000e+30 : f32
    %26 = vector.broadcast %cst_17 : f32 to vector<8x128xf32>
    %27 = arith.select %25, %22, %26 : vector<8x128xi1>, vector<8x128xf32>
    %cst_18 = arith.constant dense<0xFF800000> : vector<8xf32>
    %28 = vector.multi_reduction <maximumf>, %27, %cst_18 [1] : vector<8x128xf32> to vector<8xf32>
    %29 = vector.shape_cast %28 : vector<8xf32> to vector<8x1xf32>
    %30 = vector.broadcast %29 : vector<8x1xf32> to vector<8x128xf32>
    %31 = arith.subf %27, %30 : vector<8x128xf32>
    %32 = math.exp %31 : vector<8x128xf32>
    %cst_19 = arith.constant dense<0.000000e+00> : vector<8xf32>
    %33 = vector.multi_reduction <add>, %32, %cst_19 [1] : vector<8x128xf32> to vector<8xf32>
    %34 = vector.shape_cast %33 : vector<8xf32> to vector<8x1xf32>
    %35 = math.log %34 : vector<8x1xf32>
    %36 = vector.broadcast %35 : vector<8x1xf32> to vector<8x128xf32>
    %37 = arith.subf %31, %36 : vector<8x128xf32>
    %cst_20 = arith.constant 0.000000e+00 : f32
    %38 = vector.broadcast %cst_20 : f32 to vector<8x128xf32>
    %39 = arith.select %25, %37, %38 : vector<8x128xi1>, vector<8x128xf32>
    %c0_21 = arith.constant 0 : index
    %c0_22 = arith.constant 0 : index
    %40 = vector.load %arg8[%c0_21, %c0_22] : memref<8x128xf32, #tpu.memory_space<vmem>>, vector<8x128xf32>
    tpu.vector_store %arg8[%c0_21, %c0_22], %39 {strides = array<i32>} : memref<8x128xf32, #tpu.memory_space<vmem>>, vector<8x128xf32>,
    return
  }
  func.func @transform_0(%arg0: i32) -> (i32, i32) {
    %c0_i32 = arith.constant 0 : i32
    %c0_i32_0 = arith.constant 0 : i32
    return %arg0, %c0_i32 : i32, i32
  }
  func.func @transform_1(%arg0: i32) -> (i32, i32) {
    %c0_i32 = arith.constant 0 : i32
    %c0_i32_0 = arith.constant 0 : i32
    %c0_i32_1 = arith.constant 0 : i32
    return %c0_i32, %c0_i32_0 : i32, i32
  }
  func.func @transform_2(%arg0: i32) -> (i32, i32) {
    %c0_i32 = arith.constant 0 : i32
    %c0_i32_0 = arith.constant 0 : i32
    %c0_i32_1 = arith.constant 0 : i32
    return %c0_i32, %c0_i32_0 : i32, i32
  }
  func.func @transform_3(%arg0: i32) -> (i32, i32) {
    %c0_i32 = arith.constant 0 : i32
    %c0_i32_0 = arith.constant 0 : i32
    %c0_i32_1 = arith.constant 0 : i32
    return %c0_i32, %c0_i32_0 : i32, i32
  }
  func.func @transform_4(%arg0: i32) -> (i32, i32) {
    %c0_i32 = arith.constant 0 : i32
    %c0_i32_0 = arith.constant 0 : i32
    %c0_i32_1 = arith.constant 0 : i32
    return %c0_i32, %c0_i32_0 : i32, i32
  }
  func.func @transform_5(%arg0: i32) -> (i32, i32) {
    %c0_i32 = arith.constant 0 : i32
    %c0_i32_0 = arith.constant 0 : i32
    %c0_i32_1 = arith.constant 0 : i32
    return %c0_i32, %c0_i32_0 : i32, i32
  }
  func.func @transform_6(%arg0: i32) -> (i32, i32) {
    %c0_i32 = arith.constant 0 : i32
    %c0_i32_0 = arith.constant 0 : i32
    %c0_i32_1 = arith.constant 0 : i32
    return %c0_i32, %c0_i32_0 : i32, i32
  }
  func.func @transform_7(%arg0: i32) -> (i32, i32) {
    %c0_i32 = arith.constant 0 : i32
    %c0_i32_0 = arith.constant 0 : i32
    return %arg0, %c0_i32 : i32, i32
  }
}

</mosaic_0001>

<llo_original>
// kernel: tpu_custom_call.1
$region0: #{tpu_custom_call.1}
  #allocation0 [shape = 'u32[]', space=smem, size = 0x4, offset = 0x4, fixed_abs, tag = 'smem constant byte address 0x4 - core index']
  #allocation1 [shape = 'u32[144,128]{1,0:T(1,128)}', space=vmem, size = 0x12000, scoped, tag = 'internal scratch']
  %s0 = inlined_call_operand.vmem [shape: f32[32,32], index: 0, kind: input, shape index: {}]
  %s1 = inlined_call_operand.vmem [shape: bf16[32,64], index: 1, kind: input, shape index: {}]
  %s2 = inlined_call_operand.vmem [shape: f32[1,64], index: 2, kind: input, shape index: {}]
  %s3 = inlined_call_operand.vmem [shape: bf16[64,32], index: 3, kind: input, shape index: {}]
  %s4 = inlined_call_operand.vmem [shape: f32[1,32], index: 4, kind: input, shape index: {}]
  %s5 = inlined_call_operand.hbm [shape: bf16[32,128], index: 5, kind: input, shape index: {}]
  %s6 = inlined_call_operand.vmem [shape: f32[1,128], index: 6, kind: input, shape index: {}]
  %s7 = inlined_call_operand.hbm [shape: f32[32,128], index: 7, kind: output, shape index: {}]
  %s8 = sld [smem:[#allocation0]]
  $region65: #{tpu_custom_call.1} parent=0
    _
  %s10 = ssub.s32 1, %s8
  %s11 = scalar_select 0, %s10, %s8
  $region1: #{tpu_custom_call.1} parent=0
    #allocation2 [shape = 'u8[8192]{0}', space=vmem, size = 0x2000, scoped, tag = 'input window, operand 5, single buffered']
    #allocation3 [shape = 's32[2]{0}', space=sflag, size = 0x8, scoped, tag = 'scoped memory for tpu_custom_call.1']
    #allocation4 [shape = 's32[2]{0}', space=sflag, size = 0x8, scoped, tag = 'scoped memory for tpu_custom_call.1']
    #allocation5 [shape = 'u8[8192]{0}', space=vmem, size = 0x2000, scoped, tag = 'output window, operand 0']
    %12 = vsyncpa [#allocation3], 0
    %13 = vsyncpa [#allocation4], 0
    %s14 = scalar_lea.sflag [#allocation4], 1
    %15 = vsyncpa %s14, 0
    loop: start=0, step=1, limit=6
    $region2: #{tpu_custom_call.1} parent=1 // loop_pre_header
      _
    $region3: #{tpu_custom_call.1} parent=1 // loop_header
      %s17 = sphi 0, %s21
      %p18 = scmp.ge.s32.totalorder %s17, 6
      %s27 = sphi 0, %s29
      %s30 = sphi 0, %s27
      %s31 = sphi 0, %s30
      %s47 = sphi 0, %s31
      %s51 = sphi 0, %s51
      %s53 = sphi 0, %s51
      %s54 = sphi 0, %s53
      %s68 = sphi 0, %s54
      %s72 = sphi 0, %s72
      %s74 = sphi 0, %s72
      %s75 = sphi 0, %s74
      %s89 = sphi 0, %s75
      %s93 = sphi 0, %s93
      %s95 = sphi 0, %s93
      %s96 = sphi 0, %s95
      %s110 = sphi 0, %s96
      %s114 = sphi 0, %s114
      %s116 = sphi 0, %s114
      %s117 = sphi 0, %s116
      %s131 = sphi 0, %s117
      %s135 = sphi 0, %s135
      %s137 = sphi 0, %s135
      %s138 = sphi 0, %s137
      %s152 = sphi 0, %s138
      %s156 = sphi 0, %s156
      %s158 = sphi 0, %s156
      %s159 = sphi 0, %s158
      %s173 = sphi 0, %s159
      %s179 = sphi 0, %s181
      %s182 = sphi 0, %s179
      %s183 = sphi 0, %s182
      %s199 = sphi 0, %s183
    $region4: #{tpu_custom_call.1} parent=1 // loop_header_branch
      %20 = sbr.rel (%p18) target = $region8
    $region5: #{tpu_custom_call.1} parent=1 // loop_body
      %s22 = ssub.s32 %s17, 1
      %s23 = ssub.s32 %s17, 2
      %s24 = sadd.s32 %s17, 1
      %s25 = ssub.s32 %s17, %s24
      %p26 = scmp.eq.s32.totalorder %s25, 0
      %s28 = sadd.s32 %s27, 1
      %s29 = scalar_select %p26, %s27, %s28
      %p32 = pneg %p26
      %p33 = scmp.eq.s32.totalorder %s17, 3
      %p34 = por %p32, %p33
      %p35 = scmp.ne.s32.totalorder %s27, %s30
      %p36 = scmp.eq.s32.totalorder %s17, 0
      %p37 = por %p35, %p36
      %p38 = scmp.ne.s32.totalorder %s27, %s30
      %p39 = scmp.eq.s32.totalorder %s22, 3
      %p40 = por %p38, %p39
      %p41 = scmp.ne.s32.totalorder %s30, %s31
      %p42 = scmp.eq.s32.totalorder %s22, 0
      %p43 = por %p41, %p42
      %p44 = scmp.ne.s32.totalorder %s30, %s31
      %p45 = scmp.eq.s32.totalorder %s23, 3
      %p46 = por %p44, %p45
      %p48 = scmp.ne.s32.totalorder %s31, %s47
      %p49 = scmp.eq.s32.totalorder %s23, 0
      %p50 = por %p48, %p49
      %s52 = sadd.s32 %s51, 1
      %p55 = scmp.eq.s32.totalorder %s17, 3
      %p56 = scmp.ne.s32.totalorder %s51, %s53
      %p57 = scmp.eq.s32.totalorder %s17, 0
      %p58 = por %p56, %p57
      %p59 = scmp.ne.s32.totalorder %s51, %s53
      %p60 = scmp.eq.s32.totalorder %s22, 3
      %p61 = por %p59, %p60
      %p62 = scmp.ne.s32.totalorder %s53, %s54
      %p63 = scmp.eq.s32.totalorder %s22, 0
      %p64 = por %p62, %p63
      %p65 = scmp.ne.s32.totalorder %s53, %s54
      %p66 = scmp.eq.s32.totalorder %s23, 3
      %p67 = por %p65, %p66
      %p69 = scmp.ne.s32.totalorder %s54, %s68
      %p70 = scmp.eq.s32.totalorder %s23, 0
      %p71 = por %p69, %p70
      %s73 = sadd.s32 %s72, 1
      %p76 = scmp.eq.s32.totalorder %s17, 3
      %p77 = scmp.ne.s32.totalorder %s72, %s74
      %p78 = scmp.eq.s32.totalorder %s17, 0
      %p79 = por %p77, %p78
      %p80 = scmp.ne.s32.totalorder %s72, %s74
      %p81 = scmp.eq.s32.totalorder %s22, 3
      %p82 = por %p80, %p81
      %p83 = scmp.ne.s32.totalorder %s74, %s75
      %p84 = scmp.eq.s32.totalorder %s22, 0
      %p85 = por %p83, %p84
      %p86 = scmp.ne.s32.totalorder %s74, %s75
      %p87 = scmp.eq.s32.totalorder %s23, 3
      %p88 = por %p86, %p87
      %p90 = scmp.ne.s32.totalorder %s75, %s89
      %p91 = scmp.eq.s32.totalorder %s23, 0
      %p92 = por %p90, %p91
      %s94 = sadd.s32 %s93, 1
      %p97 = scmp.eq.s32.totalorder %s17, 3
      %p98 = scmp.ne.s32.totalorder %s93, %s95
      %p99 = scmp.eq.s32.totalorder %s17, 0
      %p100 = por %p98, %p99
      %p101 = scmp.ne.s32.totalorder %s93, %s95
      %p102 = scmp.eq.s32.totalorder %s22, 3
      %p103 = por %p101, %p102
      %p104 = scmp.ne.s32.totalorder %s95, %s96
      %p105 = scmp.eq.s32.totalorder %s22, 0
      %p106 = por %p104, %p105
      %p107 = scmp.ne.s32.totalorder %s95, %s96
      %p108 = scmp.eq.s32.totalorder %s23, 3
      %p109 = por %p107, %p108
      %p111 = scmp.ne.s32.totalorder %s96, %s110
      %p112 = scmp.eq.s32.totalorder %s23, 0
      %p113 = por %p111, %p112
      %s115 = sadd.s32 %s114, 1
      %p118 = scmp.eq.s32.totalorder %s17, 3
      %p119 = scmp.ne.s32.totalorder %s114, %s116
      %p120 = scmp.eq.s32.totalorder %s17, 0
      %p121 = por %p119, %p120
      %p122 = scmp.ne.s32.totalorder %s114, %s116
      %p123 = scmp.eq.s32.totalorder %s22, 3
      %p124 = por %p122, %p123
      %p125 = scmp.ne.s32.totalorder %s116, %s117
      %p126 = scmp.eq.s32.totalorder %s22, 0
      %p127 = por %p125, %p126
      %p128 = scmp.ne.s32.totalorder %s116, %s117
      %p129 = scmp.eq.s32.totalorder %s23, 3
      %p130 = por %p128, %p129
      %p132 = scmp.ne.s32.totalorder %s117, %s131
      %p133 = scmp.eq.s32.totalorder %s23, 0
      %p134 = por %p132, %p133
      %s136 = sadd.s32 %s135, 1
      %p139 = scmp.eq.s32.totalorder %s17, 3
      %p140 = scmp.ne.s32.totalorder %s135, %s137
      %p141 = scmp.eq.s32.totalorder %s17, 0
      %p142 = por %p140, %p141
      %p143 = scmp.ne.s32.totalorder %s135, %s137
      %p144 = scmp.eq.s32.totalorder %s22, 3
      %p145 = por %p143, %p144
      %p146 = scmp.ne.s32.totalorder %s137, %s138
      %p147 = scmp.eq.s32.totalorder %s22, 0
      %p148 = por %p146, %p147
      %p149 = scmp.ne.s32.totalorder %s137, %s138
      %p150 = scmp.eq.s32.totalorder %s23, 3
      %p151 = por %p149, %p150
      %p153 = scmp.ne.s32.totalorder %s138, %s152
      %p154 = scmp.eq.s32.totalorder %s23, 0
      %p155 = por %p153, %p154
      %s157 = sadd.s32 %s156, 1
      %p160 = scmp.eq.s32.totalorder %s17, 3
      %p161 = scmp.ne.s32.totalorder %s156, %s158
      %p162 = scmp.eq.s32.totalorder %s17, 0
      %p163 = por %p161, %p162
      %p164 = scmp.ne.s32.totalorder %s156, %s158
      %p165 = scmp.eq.s32.totalorder %s22, 3
      %p166 = por %p164, %p165
      %p167 = scmp.ne.s32.totalorder %s158, %s159
      %p168 = scmp.eq.s32.totalorder %s22, 0
      %p169 = por %p167, %p168
      %p170 = scmp.ne.s32.totalorder %s158, %s159
      %p171 = scmp.eq.s32.totalorder %s23, 3
      %p172 = por %p170, %p171
      %p174 = scmp.ne.s32.totalorder %s159, %s173
      %p175 = scmp.eq.s32.totalorder %s23, 0
      %p176 = por %p174, %p175
      %s177 = ssub.s32 %s17, %s24
      %p178 = scmp.eq.s32.totalorder %s177, 0
      %s180 = sadd.s32 %s179, 1
      %s181 = scalar_select %p178, %s179, %s180
      %p184 = pneg %p178
      %p185 = scmp.eq.s32.totalorder %s17, 3
      %p186 = por %p184, %p185
      %p187 = scmp.ne.s32.totalorder %s179, %s182
      %p188 = scmp.eq.s32.totalorder %s17, 0
      %p189 = por %p187, %p188
      %p190 = scmp.ne.s32.totalorder %s179, %s182
      %p191 = scmp.eq.s32.totalorder %s22, 3
      %p192 = por %p190, %p191
      %p193 = scmp.ne.s32.totalorder %s182, %s183
      %p194 = scmp.eq.s32.totalorder %s22, 0
      %p195 = por %p193, %p194
      %p196 = scmp.ne.s32.totalorder %s182, %s183
      %p197 = scmp.eq.s32.totalorder %s23, 3
      %p198 = por %p196, %p197
      %p200 = scmp.ne.s32.totalorder %s183, %s199
      %p201 = scmp.eq.s32.totalorder %s23, 0
      %p202 = por %p200, %p201
      %p203 = scmp.le.s32.totalorder 1, %s17
      %p204 = scmp.lt.s32.totalorder %s17, 5
      %p205 = pnand %p203, %p204
      %p206 = pneg %p205
      // Predicated region
      $region9: #{tpu_custom_call.1} parent=5 // pred_check
        _
      $region10: #{tpu_custom_call.1} parent=5 // pred_check_branch
        %208 = sbr.rel (%p205) target = $region12
      $region11: #{tpu_custom_call.1} parent=5 // pred_region
        %s209 = ssub.s32 %s17, 1
        // Predicated region
        $region13: #{tpu_custom_call.1} parent=11 // pred_check
          %p210 = pneg %p64
        $region14: #{tpu_custom_call.1} parent=11 // pred_check_branch
          %212 = sbr.rel (%p210) target = $region16
        $region15: #{tpu_custom_call.1} parent=11 // pred_region
          _
        $region16: #{tpu_custom_call.1} parent=11 // pred_fallthru
          _
        // Predicated region
        $region17: #{tpu_custom_call.1} parent=11 // pred_check
          %p213 = pneg %p85
        $region18: #{tpu_custom_call.1} parent=11 // pred_check_branch
          %215 = sbr.rel (%p213) target = $region20
        $region19: #{tpu_custom_call.1} parent=11 // pred_region
          _
        $region20: #{tpu_custom_call.1} parent=11 // pred_fallthru
          _
        // Predicated region
        $region21: #{tpu_custom_call.1} parent=11 // pred_check
          %p216 = pneg %p106
        $region22: #{tpu_custom_call.1} parent=11 // pred_check_branch
          %218 = sbr.rel (%p216) target = $region24
        $region23: #{tpu_custom_call.1} parent=11 // pred_region
          _
        $region24: #{tpu_custom_call.1} parent=11 // pred_fallthru
          _
        // Predicated region
        $region25: #{tpu_custom_call.1} parent=11 // pred_check
          %p219 = pneg %p127
        $region26: #{tpu_custom_call.1} parent=11 // pred_check_branch
          %221 = sbr.rel (%p219) target = $region28
        $region27: #{tpu_custom_call.1} parent=11 // pred_region
          _
        $region28: #{tpu_custom_call.1} parent=11 // pred_fallthru
          _
        // Predicated region
        $region29: #{tpu_custom_call.1} parent=11 // pred_check
          %p222 = pneg %p148
        $region30: #{tpu_custom_call.1} parent=11 // pred_check_branch
          %224 = sbr.rel (%p222) target = $region32
        $region31: #{tpu_custom_call.1} parent=11 // pred_region
          %s226 = ssub.s32 256, 256
          %227 = vsyncadd [#allocation3], %s226
          %s228 = sshll.u32 [#allocation2], 4
          %s229 = int_to_ptr.vmem [resolvable:$true] %s228
          %234 = dma.hbm_to_vmem [thread:$0]  %s5, 256, %s229, [#allocation3], 64, 64, 4
        $region32: #{tpu_custom_call.1} parent=11 // pred_fallthru
          _
        // Predicated region
        $region33: #{tpu_custom_call.1} parent=11 // pred_check
          %p235 = pneg %p169
        $region34: #{tpu_custom_call.1} parent=11 // pred_check_branch
          %237 = sbr.rel (%p235) target = $region36
        $region35: #{tpu_custom_call.1} parent=11 // pred_region
          _
        $region36: #{tpu_custom_call.1} parent=11 // pred_fallthru
          _
      $region12: #{tpu_custom_call.1} parent=5 // pred_fallthru
        _
      %p238 = scmp.lt.s32.totalorder %s17, 4
      // Predicated region
      $region37: #{tpu_custom_call.1} parent=5 // pred_check
        %p239 = pneg %p238
      $region38: #{tpu_custom_call.1} parent=5 // pred_check_branch
        %241 = sbr.rel (%p239) target = $region40
      $region39: #{tpu_custom_call.1} parent=5 // pred_region
        // Predicated region
        $region41: #{tpu_custom_call.1} parent=39 // pred_check
          %p242 = pneg %p37
        $region42: #{tpu_custom_call.1} parent=39 // pred_check_branch
          %244 = sbr.rel (%p242) target = $region44
        $region43: #{tpu_custom_call.1} parent=39 // pred_region
          %p245 = scmp.lt.s32.totalorder %s17, 3
          %s246 = scalar_select %p245, %s17, 3
          %s247 = smul.addr %s246, 8
          %s248 = scalar_lea.vmem %s0, %s247
        $region44: #{tpu_custom_call.1} parent=39 // pred_fallthru
          _
      $region40: #{tpu_custom_call.1} parent=5 // pred_fallthru
        _
      %p249 = scmp.le.s32.totalorder 1, %s17
      %p250 = scmp.lt.s32.totalorder %s17, 5
      %p251 = pnand %p249, %p250
      %p252 = pneg %p251
      // Predicated region
      $region45: #{tpu_custom_call.1} parent=5 // pred_check
        _
      $region46: #{tpu_custom_call.1} parent=5 // pred_check_branch
        %254 = sbr.rel (%p251) target = $region48
      $region47: #{tpu_custom_call.1} parent=5 // pred_region
        %s255 = ssub.s32 %s17, 1
        // Predicated region
        $region49: #{tpu_custom_call.1} parent=47 // pred_check
          %p256 = pneg %p148
        $region50: #{tpu_custom_call.1} parent=47 // pred_check_branch
          %258 = sbr.rel (%p256) target = $region52
        $region51: #{tpu_custom_call.1} parent=47 // pred_region
          %259 = dma.done [#allocation3], 256
        $region52: #{tpu_custom_call.1} parent=47 // pred_fallthru
          _
        %p260 = scmp.lt.s32.totalorder %s22, 3
        %s261 = scalar_select %p260, %s22, 3
        %s262 = smul.addr %s261, 8
        %s263 = scalar_lea.vmem %s0, %s262
        %p264 = pneg %p43
        %p265 = pneg %p40
        %p266 = pneg %p64
        %p267 = pneg %p61
        %p268 = pneg %p85
        %p269 = pneg %p82
        %p270 = pneg %p106
        %p271 = pneg %p103
        %p272 = pneg %p127
        %p273 = pneg %p124
        %p274 = pneg %p148
        %p275 = pneg %p145
        %p276 = pneg %p169
        %p277 = pneg %p166
        %p278 = pneg %p195
        %p279 = pneg %p192
        %s280 = sand.u32 %s182, 1
        %s281 = scalar_lea.sflag [#allocation4], %s280
        %s282 = sand.u32 %s182, 1
        %s283 = smul.addr %s282, 8
        %s284 = scalar_lea.vmem [#allocation5], %s283
        %p285 = scmp.lt.s32.totalorder %s22, 3
        %s286 = scalar_select %p285, %s22, 3
        %s287 = smul.addr %s286, 8
        %s288 = scalar_lea.vmem %s0, %s287
        %v290 = vld [vmem:[%s288] sm:$0xff]
        %v291 = vld [vmem:[%s1] sm:$0xf]
        %v292 = vld [vmem:[%s1 + $0x4] sm:$0xf]
        %v293 = vld [vmem:[%s1 + $0x8] sm:$0xf]
        %v294 = vld [vmem:[%s1 + $0xc] sm:$0xf]
        %v295 = vld [vmem:[%s2] sm:$0x1]
        %v296 = vpack.c.bf16 %v290, %v290
        %v298 = vlaneseq
        %v299 = vshrl.u32 %v298, 7
        %v300 = vsub.s32 0, %v299
        %v301 = vrot.slane %v295, %v300
        %v307 = vunpack.c.l.b16 %v291
        %v308 = vunpack.c.l.b16 %v292
        %v309 = vunpack.c.l.b16 %v293
        %v310 = vunpack.c.l.b16 %v294
        %v311 = vpack.c.b16 %v308, %v307
        %v312 = vpack.c.b16 %v310, %v309
        %vm315 = vcmask 261120
        %v317 = vsel %vm315, %v296, 0
        %319 = vmatprep.subr.bf16.mxu0 0
        %320 = vmatpush1.bf16.msra.mxu0 0
        %321 = vmatprep.subr.bf16.mxu0 0
        %322 = vmatpush1.bf16.msra.mxu0 0
        %323 = vmatprep.subr.bf16.mxu0 0
        %324 = vmatpush1.bf16.msra.mxu0 0
        %325 = vmatprep.subr.bf16.mxu0 0
        %326 = vmatpush1.bf16.msra.mxu0 0
        %327 = vmatprep.subr.bf16.mxu0 0
        %328 = vmatpush1.bf16.msra.mxu0 0
        %329 = vmatprep.subr.bf16.mxu0 0
        %330 = vmatpush1.bf16.msra.mxu0 0
        %331 = vmatprep.subr.bf16.mxu0 0
        %332 = vmatpush1.bf16.msra.mxu0 %v312
        %333 = vmatprep.subr.bf16.mxu0 0
        %334 = vmatpush1.bf16.msra.mxu0 %v311
        %335 = vmatprep.subr.bf16.mxu0 0
        %336 = vmatpush2.bf16.msra.mxu0 0
        %337 = vmatprep.subr.bf16.mxu0 0
        %338 = vmatpush2.bf16.msra.mxu0 0
        %339 = vmatprep.subr.bf16.mxu0 0
        %340 = vmatpush2.bf16.msra.mxu0 0
        %341 = vmatprep.subr.bf16.mxu0 0
        %342 = vmatpush2.bf16.msra.mxu0 0
        %343 = vmatprep.subr.bf16.mxu0 0
        %344 = vmatpush2.bf16.msra.mxu0 0
        %345 = vmatprep.subr.bf16.mxu0 0
        %346 = vmatpush2.bf16.msra.mxu0 0
        %347 = vmatprep.subr.bf16.mxu0 0
        %348 = vmatpush2.bf16.msra.mxu0 0
        %349 = vmatprep.subr.bf16.mxu0 0
        %350 = vmatpush2.bf16.msra.mxu0 0
        %351 = vmatprep.mubr.bf16.mxu0 0
        %352 = vmatmul.mubr.bf16.gmra.mxu0 %v317
        %v353 = vpop.f32.mrf.mxu0
        %v354 = vadd.f32 %v301, %v353
        %v355 = vpop.f32.mrf.mxu0
        %v356 = vpop.f32.mrf.mxu0
        %v357 = vpop.f32.mrf.mxu0
        %358 = vdwg.mxu0
        %v359 = vmax.f32 %v354, 0.0
        %v360 = vld [vmem:[%s3] sm:$0xf]
        %v361 = vld [vmem:[%s3 + $0x4] sm:$0xf]
        %v362 = vld [vmem:[%s3 + $0x8] sm:$0xf]
        %v363 = vld [vmem:[%s3 + $0xc] sm:$0xf]
        %v364 = vld [vmem:[%s3 + $0x10] sm:$0xf]
        %v365 = vld [vmem:[%s3 + $0x14] sm:$0xf]
        %v366 = vld [vmem:[%s3 + $0x18] sm:$0xf]
        %v367 = vld [vmem:[%s3 + $0x1c] sm:$0xf]
        %v368 = vld [vmem:[%s4] sm:$0x1]
        %v369 = vpack.c.bf16 %v359, %v359
        %v371 = vlaneseq
        %v372 = vshrl.u32 %v371, 7
        %v373 = vsub.s32 0, %v372
        %v374 = vrot.slane %v368, %v373
        %v384 = vunpack.c.l.b16 %v360
        %v385 = vunpack.c.l.b16 %v361
        %v386 = vunpack.c.l.b16 %v362
        %v387 = vunpack.c.l.b16 %v363
        %v388 = vunpack.c.l.b16 %v364
        %v389 = vunpack.c.l.b16 %v365
        %v390 = vunpack.c.l.b16 %v366
        %v391 = vunpack.c.l.b16 %v367
        %v392 = vpack.c.b16 %v385, %v384
        %v393 = vpack.c.b16 %v387, %v386
        %v394 = vpack.c.b16 %v389, %v388
        %v395 = vpack.c.b16 %v391, %v390
        %vm400 = vcmask 523264
        %v402 = vsel %vm400, %v369, 0
        %404 = vmatprep.subr.bf16.mxu0 0
        %405 = vmatpush1.bf16.msra.mxu0 0
        %406 = vmatprep.subr.bf16.mxu0 0
        %407 = vmatpush1.bf16.msra.mxu0 0
        %408 = vmatprep.subr.bf16.mxu0 0
        %409 = vmatpush1.bf16.msra.mxu0 0
        %410 = vmatprep.subr.bf16.mxu0 0
        %411 = vmatpush1.bf16.msra.mxu0 0
        %412 = vmatprep.subr.bf16.mxu0 0
        %413 = vmatpush1.bf16.msra.mxu0 %v395
        %414 = vmatprep.subr.bf16.mxu0 0
        %415 = vmatpush1.bf16.msra.mxu0 %v394
        %416 = vmatprep.subr.bf16.mxu0 0
        %417 = vmatpush1.bf16.msra.mxu0 %v393
        %418 = vmatprep.subr.bf16.mxu0 0
        %419 = vmatpush1.bf16.msra.mxu0 %v392
        %420 = vmatprep.subr.bf16.mxu0 0
        %421 = vmatpush2.bf16.msra.mxu0 0
        %422 = vmatprep.subr.bf16.mxu0 0
        %423 = vmatpush2.bf16.msra.mxu0 0
        %424 = vmatprep.subr.bf16.mxu0 0
        %425 = vmatpush2.bf16.msra.mxu0 0
        %426 = vmatprep.subr.bf16.mxu0 0
        %427 = vmatpush2.bf16.msra.mxu0 0
        %428 = vmatprep.subr.bf16.mxu0 0
        %429 = vmatpush2.bf16.msra.mxu0 0
        %430 = vmatprep.subr.bf16.mxu0 0
        %431 = vmatpush2.bf16.msra.mxu0 0
        %432 = vmatprep.subr.bf16.mxu0 0
        %433 = vmatpush2.bf16.msra.mxu0 0
        %434 = vmatprep.subr.bf16.mxu0 0
        %435 = vmatpush2.bf16.msra.mxu0 0
        %436 = vmatprep.mubr.bf16.mxu0 0
        %437 = vmatmul.mubr.bf16.gmra.mxu0 %v402
        %v438 = vpop.f32.mrf.mxu0
        %v439 = vadd.f32 %v374, %v438
        %v440 = vpop.f32.mrf.mxu0
        %v441 = vpop.f32.mrf.mxu0
        %v442 = vpop.f32.mrf.mxu0
        %443 = vdwg.mxu0
        %v444 = vmax.f32 %v439, 0.0
        %v445 = vld [vmem:[#allocation2] sm:$0xf]
        %v446 = vld [vmem:[#allocation2 + $0x4] sm:$0xf]
        %v447 = vld [vmem:[#allocation2 + $0x8] sm:$0xf]
        %v448 = vld [vmem:[#allocation2 + $0xc] sm:$0xf]
        %v449 = vld [vmem:[%s6] sm:$0x1]
        %v450 = vpack.c.bf16 %v444, %v444
        %v452 = vlaneseq
        %v453 = vshrl.u32 %v452, 7
        %v454 = vsub.s32 0, %v453
        %v455 = vrot.slane %v449, %v454
        %v461 = vunpack.c.l.b16 %v445
        %v462 = vunpack.c.l.b16 %v446
        %v463 = vunpack.c.l.b16 %v447
        %v464 = vunpack.c.l.b16 %v448
        %v465 = vpack.c.b16 %v462, %v461
        %v466 = vpack.c.b16 %v464, %v463
        %v470 = vsel %vm315, %v450, 0
        %472 = vmatprep.subr.bf16.mxu0 0
        %473 = vmatpush1.bf16.msra.mxu0 0
        %474 = vmatprep.subr.bf16.mxu0 0
        %475 = vmatpush1.bf16.msra.mxu0 0
        %476 = vmatprep.subr.bf16.mxu0 0
        %477 = vmatpush1.bf16.msra.mxu0 0
        %478 = vmatprep.subr.bf16.mxu0 0
        %479 = vmatpush1.bf16.msra.mxu0 0
        %480 = vmatprep.subr.bf16.mxu0 0
        %481 = vmatpush1.bf16.msra.mxu0 0
        %482 = vmatprep.subr.bf16.mxu0 0
        %483 = vmatpush1.bf16.msra.mxu0 0
        %484 = vmatprep.subr.bf16.mxu0 0
        %485 = vmatpush1.bf16.msra.mxu0 %v466
        %486 = vmatprep.subr.bf16.mxu0 0
        %487 = vmatpush1.bf16.msra.mxu0 %v465
        %488 = vmatprep.subr.bf16.mxu0 0
        %489 = vmatpush2.bf16.msra.mxu0 0
        %490 = vmatprep.subr.bf16.mxu0 0
        %491 = vmatpush2.bf16.msra.mxu0 0
        %492 = vmatprep.subr.bf16.mxu0 0
        %493 = vmatpush2.bf16.msra.mxu0 0
        %494 = vmatprep.subr.bf16.mxu0 0
        %495 = vmatpush2.bf16.msra.mxu0 0
        %496 = vmatprep.subr.bf16.mxu0 0
        %497 = vmatpush2.bf16.msra.mxu0 0
        %498 = vmatprep.subr.bf16.mxu0 0
        %499 = vmatpush2.bf16.msra.mxu0 0
        %500 = vmatprep.subr.bf16.mxu0 0
        %501 = vmatpush2.bf16.msra.mxu0 0
        %502 = vmatprep.subr.bf16.mxu0 0
        %503 = vmatpush2.bf16.msra.mxu0 0
        %504 = vmatprep.mubr.bf16.mxu0 0
        %505 = vmatmul.mubr.bf16.gmra.mxu0 %v470
        %v506 = vpop.f32.mrf.mxu0
        %v507 = vadd.f32 %v455, %v506
        %v508 = vpop.f32.mrf.mxu0
        %v509 = vpop.f32.mrf.mxu0
        %v510 = vpop.f32.mrf.mxu0
        %511 = vdwg.mxu0
        %v512 = vlaneseq
        %v513 = vand.u32 %v512, 127
        %vm514 = vcmp.lt.s32.totalorder %v513, 5
        %v515 = vsel %vm514, %v507, -1e+30
        %516 = vmax.xlane.f32.xlu0 %v515
        %v517 = vpop.xlane.xlu0 %516
        %v518 = vsub.f32 %v515, %v517
        %v519 = vmul.f32 %v518, 1.442695
        %v520 = vpow.pop %v519
        %521 = vadd.xlane.f32.xlu0 %v520
        %v522 = vpop.xlane.xlu0 %521
        %v523 = vlog2.pop %v522
        %v524 = vmul.f32 %v523, 0.6931472
        %v525 = vsub.f32 %v518, %v524
        %v526 = vsel %vm514, %v525, 0.0
        %527 = vst [vmem:[%s284] sm:$0xff] %v526
        %s528 = sand.u32 %s182, 1
        %s529 = scalar_lea.sflag [#allocation4], %s528
        %s530 = sand.u32 %s182, 1
        %s531 = smul.addr %s530, 8
        %s532 = scalar_lea.vmem [#allocation5], %s531
        // Predicated region
        $region53: #{tpu_custom_call.1} parent=47 // pred_check
          %p533 = pneg %p192
        $region54: #{tpu_custom_call.1} parent=47 // pred_check_branch
          %535 = sbr.rel (%p533) target = $region56
        $region55: #{tpu_custom_call.1} parent=47 // pred_region
          %s537 = ssub.s32 128, 128
          %538 = vsyncadd %s529, %s537
          %s539 = smul.addr %s22, 128
          %s540 = scalar_lea.hbm %s7, %s539
          %s542 = sshll.u32 %s532, 4
          %s543 = int_to_ptr.vmem [resolvable:$true] %s542
          %545 = dma.vmem_to_hbm [thread:$0]  %s543, 128, %s540, %s529
        $region56: #{tpu_custom_call.1} parent=47 // pred_fallthru
          _
      $region48: #{tpu_custom_call.1} parent=5 // pred_fallthru
        _
      %p546 = scmp.le.s32.totalorder 2, %s17
      // Predicated region
      $region57: #{tpu_custom_call.1} parent=5 // pred_check
        %p547 = pneg %p546
      $region58: #{tpu_custom_call.1} parent=5 // pred_check_branch
        %549 = sbr.rel (%p547) target = $region60
      $region59: #{tpu_custom_call.1} parent=5 // pred_region
        %s550 = ssub.s32 %s17, 2
        // Predicated region
        $region61: #{tpu_custom_call.1} parent=59 // pred_check
          %p551 = pneg %p198
        $region62: #{tpu_custom_call.1} parent=59 // pred_check_branch
          %553 = sbr.rel (%p551) target = $region64
        $region63: #{tpu_custom_call.1} parent=59 // pred_region
          %s554 = sand.u32 %s183, 1
          %s555 = scalar_lea.sflag [#allocation4], %s554
          %s556 = sand.u32 %s183, 1
          %s557 = smul.addr %s556, 8
          %s558 = scalar_lea.vmem [#allocation5], %s557
          %559 = dma.done %s555, 128
        $region64: #{tpu_custom_call.1} parent=59 // pred_fallthru
          _
      $region60: #{tpu_custom_call.1} parent=5 // pred_fallthru
        _
    $region6: #{tpu_custom_call.1} parent=1 // loop_footer
      %s21 = sadd.s32 1, %s17
    $region7: #{tpu_custom_call.1} parent=1 // loop_footer_branch
      %16 = sbr.rel target = $region3
    $region8: #{tpu_custom_call.1} parent=1 // loop_exit
      _
    %560 = vsyncpa [#allocation3], 1
    %s561 = scalar_lea.sflag [#allocation3], 1
    %562 = vsyncpa %s561, 1
    %563 = vsyncpa [#allocation4], 1
    %s564 = scalar_lea.sflag [#allocation4], 1
    %565 = vsyncpa %s564, 1

</llo_original>
